<compile_context>
chip_gen: v5e
topology: v5e:2x2
jax: 0.10.0
libtpu: 0.0.40
codegen_flags: <defaults>
</compile_context>

<pallas_src>
import functools

import jax
import jax.numpy as jnp
from jax.experimental import pallas as pl
from jax.experimental.pallas import tpu as pltpu

LN_EPS = 1e-12


def _layer_norm(x, gamma, beta):
    # LayerNorm over the last dim (hidden), matching FusedLayerNorm(eps=1e-12).
    mean = jnp.mean(x, axis=-1, keepdims=True)
    xc = x - mean
    var = jnp.mean(xc * xc, axis=-1, keepdims=True)
    inv = jax.lax.rsqrt(var + LN_EPS)
    return xc * inv * gamma + beta


def _uniter_img_emb_kernel(
    img_ref,        # (tm, img_dim)                  io_dtype
    pos_ref,        # (tm, 8)   col 7 == mask value  io_dtype
    type_ref,       # (tm, hidden)                   io_dtype
    w_img_ref,      # (img_dim, hidden)              io_dtype
    w_pos_ref,      # (8, hidden)  row 7 == 0        io_dtype
    pcat_ref,       # (8, hidden) f32:
                    #   0 b_img, 1 b_pos, 2 g_img, 3 be_img,
                    #   4 g_pos, 5 be_pos, 6 g_out, 7 be_out
    maskv_ref,      # (1, hidden) f32 == mask_embedding.weight[1] @ w_img
    out_ref,        # (tm, hidden)
    *, use_type,
):
    x_img = img_ref[...]
    x_pos = pos_ref[...]
    mask = x_pos[:, 7:8].astype(jnp.float32)          # (tm, 1) in {0., 1.}

    b_img = pcat_ref[0:1, :]
    b_pos = pcat_ref[1:2, :]
    g_img, be_img = pcat_ref[2:3, :], pcat_ref[3:4, :]
    g_pos, be_pos = pcat_ref[4:5, :], pcat_ref[5:6, :]
    g_out, be_out = pcat_ref[6:7, :], pcat_ref[7:8, :]

    # img_linear + folded mask correction + img_layer_norm
    t_im = jnp.dot(x_img, w_img_ref[...], preferred_element_type=jnp.float32)
    t_im = t_im + mask * maskv_ref[...] + b_img
    t_im = _layer_norm(t_im, g_img, be_img)

    # pos_linear (K padded to 8; extra column hits a zero weight row) + LN
    t_pos = jnp.dot(x_pos, w_pos_ref[...], preferred_element_type=jnp.float32)
    t_pos = t_pos + b_pos
    t_pos = _layer_norm(t_pos, g_pos, be_pos)

    emb = t_im + t_pos
    if use_type:
        emb = emb + type_ref[...].astype(jnp.float32)

    emb = _layer_norm(emb, g_out, be_out)
    out_ref[...] = emb.astype(out_ref.dtype)


def _round_up(a, b):
    return (a + b - 1) // b * b


def uniter_image_embeddings(
    img_feat,          # (B, N, img_dim)
    img_pos_feat,      # (B, N, 7)
    type_embeddings,   # (B, N, hidden)
    img_masks,         # (B, N) int, or None
    params,            # dict of weights (f32)
    *,
    model_mode="standard",   # "two_flow" skips type_embeddings
    tm=256,                  # row tile; multiple of 8 (use 512 on v6e/v7x)
    io_dtype=jnp.float32,    # set jnp.bfloat16 to halve HBM traffic
    vmem_limit_bytes=64 * 1024 * 1024,
):
    B, N, img_dim = img_feat.shape
    hidden = params["w_img"].shape[1]
    M = B * N

    if img_masks is None:
        img_masks = jnp.zeros((B, N), jnp.int32)

    # Effective row tile: multiple of 8, never larger than the (rounded) row
    # count, so tiny problems don't get blown up to a 256-row tile.
    tm_eff = _round_up(min(tm, _round_up(M, 8)), 8)
    m_pad = _round_up(M, tm_eff)
    grid = m_pad // tm_eff

    img2 = img_feat.reshape(M, img_dim).astype(io_dtype)
    mask2 = img_masks.reshape(M, 1).astype(io_dtype)
    pos2 = img_pos_feat.reshape(M, 7).astype(io_dtype)
    # Pad K=7 -> 8 and pack the mask into column 7 (its weight row is zero).
    pos8 = jnp.concatenate([pos2, mask2], axis=1)
    type2 = type_embeddings.reshape(M, hidden).astype(io_dtype)

    if m_pad != M:
        pad = m_pad - M
        img2 = jnp.pad(img2, ((0, pad), (0, 0)))
        pos8 = jnp.pad(pos8, ((0, pad), (0, 0)))
        type2 = jnp.pad(type2, ((0, pad), (0, 0)))

    w_img = params["w_img"].astype(io_dtype)
    w_pos8 = jnp.concatenate(
        [params["w_pos"], jnp.zeros((1, hidden), params["w_pos"].dtype)], axis=0
    ).astype(io_dtype)

    # Folded mask correction: (img + m*e1) @ W == img @ W + m * (e1 @ W).
    # mask_embedding row 0 is forced to zero (padding_idx=0), so only row 1 matters.
    mask_v = jnp.dot(
        params["mask_emb1"].astype(jnp.float32),
        params["w_img"].astype(jnp.float32),
    )  # (1, hidden), f32

    pcat = jnp.concatenate(
        [params["b_img"], params["b_pos"],
         params["g_img"], params["be_img"],
         params["g_pos"], params["be_pos"],
         params["g_out"], params["be_out"]],
        axis=0,
    ).astype(jnp.float32)  # (8, hidden)

    row_spec = lambda cols: pl.BlockSpec((tm_eff, cols), lambda i: (i, 0))
    const_spec = lambda r, c: pl.BlockSpec((r, c), lambda i: (0, 0))

    kernel = functools.partial(
        _uniter_img_emb_kernel, use_type=(model_mode != "two_flow")
    )

    out = pl.pallas_call(
        kernel,
        out_shape=jax.ShapeDtypeStruct((m_pad, hidden), io_dtype),
        grid_spec=pltpu.PrefetchScalarGridSpec(
            num_scalar_prefetch=0,
            grid=(grid,),
            in_specs=[
                row_spec(img_dim),            # img_feat rows
                row_spec(8),                  # pos rows (+ mask in col 7)
                row_spec(hidden),             # type embedding rows
                const_spec(img_dim, hidden),  # w_img
                const_spec(8, hidden),        # w_pos (padded)
                const_spec(8, hidden),        # concatenated bias/LN params
                const_spec(1, hidden),        # mask correction vector
            ],
            out_specs=pl.BlockSpec((tm_eff, hidden), lambda i: (i, 0)),
        ),
        compiler_params=pltpu.CompilerParams(
            dimension_semantics=("parallel",),
            vmem_limit_bytes=vmem_limit_bytes,
        ),
    )(img2, pos8, type2, w_img, w_pos8, pcat, mask_v)

    return out[:M].reshape(B, N, hidden)


def _reference(img_feat, img_pos_feat, type_embeddings, img_masks, params,
               model_mode="standard"):
    mask = img_masks.astype(jnp.float32)[..., None] * params["mask_emb1"][0]
    x = img_feat + mask
    t_im = jnp.einsum("bnd,dh->bnh", x, params["w_img"]) + params["b_img"][0]
    t_im = _layer_norm(t_im, params["g_img"][0], params["be_img"][0])
    t_pos = jnp.einsum("bnd,dh->bnh", img_pos_feat, params["w_pos"]) + params["b_pos"][0]
    t_pos = _layer_norm(t_pos, params["g_pos"][0], params["be_pos"][0])
    emb = t_im + t_pos
    if model_mode != "two_flow":
        emb = emb + type_embeddings
    return _layer_norm(emb, params["g_out"][0], params["be_out"][0])


if __name__ == "__main__":
    key = jax.random.PRNGKey(0)
    B, N, img_dim, hidden = 2, 8, 16, 32

    keys = jax.random.split(key, 12)
    params = {
        "w_img": jax.random.normal(keys[0], (img_dim, hidden), jnp.float32) * 0.02,
        "b_img": jax.random.normal(keys[1], (1, hidden), jnp.float32) * 0.02,
        "w_pos": jax.random.normal(keys[2], (7, hidden), jnp.float32) * 0.02,
        "b_pos": jax.random.normal(keys[3], (1, hidden), jnp.float32) * 0.02,
        "g_img": jnp.ones((1, hidden), jnp.float32),
        "be_img": jnp.zeros((1, hidden), jnp.float32),
        "g_pos": jnp.ones((1, hidden), jnp.float32),
        "be_pos": jnp.zeros((1, hidden), jnp.float32),
        "g_out": jnp.ones((1, hidden), jnp.float32),
        "be_out": jnp.zeros((1, hidden), jnp.float32),
        # mask_embedding.weight has shape (2, img_dim); row 0 is forced to
        # zero (padding_idx), so only row 1 matters.
        "mask_emb1": jax.random.normal(keys[4], (1, img_dim), jnp.float32) * 0.02,
    }

    img_feat = jax.random.normal(keys[5], (B, N, img_dim), jnp.float32)
    img_pos_feat = jax.random.uniform(keys[6], (B, N, 7), jnp.float32)
    type_embeddings = jax.random.normal(keys[7], (B, N, hidden), jnp.float32) * 0.1
    img_masks = (jax.random.uniform(keys[8], (B, N)) > 0.5).astype(jnp.int32)

    # Main check (standard mode, f32 I/O).
    out = uniter_image_embeddings(
        img_feat, img_pos_feat, type_embeddings, img_masks, params
    )
    out = jax.block_until_ready(out)
    ref = _reference(img_feat, img_pos_feat, type_embeddings, img_masks, params)
    assert out.shape == (B, N, hidden)
    assert jnp.allclose(out, ref, atol=1e-4, rtol=1e-4), "mismatch vs reference"

    # Tail / padding path: M = 2*5 = 10 rows with an 8-row tile -> cdiv grid.
    N2 = 5
    out2 = uniter_image_embeddings(
        img_feat[:, :N2], img_pos_feat[:, :N2], type_embeddings[:, :N2],
        img_masks[:, :N2], params, tm=8,
    )
    out2 = jax.block_until_ready(out2)
    ref2 = _reference(
        img_feat[:, :N2], img_pos_feat[:, :N2], type_embeddings[:, :N2],
        img_masks[:, :N2], params,
    )
    assert out2.shape == (B, N2, hidden)
    assert jnp.allclose(out2, ref2, atol=1e-4, rtol=1e-4), "tail mismatch vs reference"

    print("KERNEL_OK")
</pallas_src>

<mosaic_0001>
module attributes {stable_mosaic.version = 11 : i64} {
  func.func @_uniter_img_emb_kernel(%arg0: i32, %arg1: memref<16x16xf32, #tpu.memory_space<vmem>>, %arg2: memref<16x8xf32, #tpu.memory_space<vmem>>, %arg3: memref<16x32xf32, #tpu.memory_space<vmem>>, %arg4: memref<16x32xf32, #tpu.memory_space<vmem>>, %arg5: memref<8x32xf32, #tpu.memory_space<vmem>>, %arg6: memref<8x32xf32, #tpu.memory_space<vmem>>, %arg7: memref<1x32xf32, #tpu.memory_space<vmem>>, %arg8: memref<16x32xf32, #tpu.memory_space<vmem>>) attributes {dimension_semantics = [#tpu.dimension_semantics<parallel>], iteration_bounds = array<i64: 1>, scalar_prefetch = 0 : i64, scratch_operands = 0 : i64, tpu.core_type = #tpu.core_type<tc>, window_params = [{transform_indices = @transform_0, window_bounds = array<i64: 16, 16>}, {transform_indices = @transform_1, window_bounds = array<i64: 16, 8>}, {transform_indices = @transform_2, window_bounds = array<i64: 16, 32>}, {pipeline_mode = #tpu.pipeline_mode<synchronous>, transform_indices = @transform_3, window_bounds = array<i64: 16, 32>}, {pipeline_mode = #tpu.pipeline_mode<synchronous>, transform_indices = @transform_4, window_bounds = array<i64: 8, 32>}, {pipeline_mode = #tpu.pipeline_mode<synchronous>, transform_indices = @transform_5, window_bounds = array<i64: 8, 32>}, {pipeline_mode = #tpu.pipeline_mode<synchronous>, transform_indices = @transform_6, window_bounds = array<i64: 1, 32>}, {transform_indices = @transform_7, window_bounds = array<i64: 16, 32>}]} {
    %c0 = arith.constant 0 : index
    %c0_0 = arith.constant 0 : index
    %0 = vector.load %arg1[%c0, %c0_0] : memref<16x16xf32, #tpu.memory_space<vmem>>, vector<16x16xf32>
    %c0_1 = arith.constant 0 : index
    %c0_2 = arith.constant 0 : index
    %1 = vector.load %arg2[%c0_1, %c0_2] : memref<16x8xf32, #tpu.memory_space<vmem>>, vector<16x8xf32>
    %2 = vector.extract_strided_slice %1 {offsets = [0, 7], sizes = [16, 1], strides = [1, 1]} : vector<16x8xf32> to vector<16x1xf32>
    %c0_3 = arith.constant 0 : index
    %c0_4 = arith.constant 0 : index
    %3 = vector.load %arg6[%c0_3, %c0_4] : memref<8x32xf32, #tpu.memory_space<vmem>>, vector<1x32xf32>
    %c1 = arith.constant 1 : index
    %c0_5 = arith.constant 0 : index
    %4 = vector.load %arg6[%c1, %c0_5] : memref<8x32xf32, #tpu.memory_space<vmem>>, vector<1x32xf32>
    %c2 = arith.constant 2 : index
    %c0_6 = arith.constant 0 : index
    %5 = vector.load %arg6[%c2, %c0_6] : memref<8x32xf32, #tpu.memory_space<vmem>>, vector<1x32xf32>
    %c3 = arith.constant 3 : index
    %c0_7 = arith.constant 0 : index
    %6 = vector.load %arg6[%c3, %c0_7] : memref<8x32xf32, #tpu.memory_space<vmem>>, vector<1x32xf32>
    %c4 = arith.constant 4 : index
    %c0_8 = arith.constant 0 : index
    %7 = vector.load %arg6[%c4, %c0_8] : memref<8x32xf32, #tpu.memory_space<vmem>>, vector<1x32xf32>
    %c5 = arith.constant 5 : index
    %c0_9 = arith.constant 0 : index
    %8 = vector.load %arg6[%c5, %c0_9] : memref<8x32xf32, #tpu.memory_space<vmem>>, vector<1x32xf32>
    %c6 = arith.constant 6 : index
    %c0_10 = arith.constant 0 : index
    %9 = vector.load %arg6[%c6, %c0_10] : memref<8x32xf32, #tpu.memory_space<vmem>>, vector<1x32xf32>
    %c7 = arith.constant 7 : index
    %c0_11 = arith.constant 0 : index
    %10 = vector.load %arg6[%c7, %c0_11] : memref<8x32xf32, #tpu.memory_space<vmem>>, vector<1x32xf32>
    %c0_12 = arith.constant 0 : index
    %c0_13 = arith.constant 0 : index
    %11 = vector.load %arg4[%c0_12, %c0_13] : memref<16x32xf32, #tpu.memory_space<vmem>>, vector<16x32xf32>
    %cst = arith.constant dense<0.000000e+00> : vector<16x32xf32>
    %12 = tpu.matmul %0, %11, %cst {dimension_numbers = #tpu.dot_dimension_numbers<[1], [0], [0], [1], [0, 0, 1, 1], [], []>} : vector<16x16xf32>, vector<16x32xf32>, vector<16x32xf32> -> vector<16x32xf32>
    %c0_14 = arith.constant 0 : index
    %c0_15 = arith.constant 0 : index
    %13 = vector.load %arg7[%c0_14, %c0_15] : memref<1x32xf32, #tpu.memory_space<vmem>>, vector<1x32xf32>
    %14 = vector.broadcast %2 : vector<16x1xf32> to vector<16x32xf32>
    %15 = vector.broadcast %13 : vector<1x32xf32> to vector<16x32xf32>
    %16 = arith.mulf %14, %15 : vector<16x32xf32>
    %17 = arith.addf %12, %16 : vector<16x32xf32>
    %18 = vector.broadcast %3 : vector<1x32xf32> to vector<16x32xf32>
    %19 = arith.addf %17, %18 : vector<16x32xf32>
    %cst_16 = arith.constant dense<0.000000e+00> : vector<16xf32>
    %20 = vector.multi_reduction <add>, %19, %cst_16 [1] : vector<16x32xf32> to vector<16xf32>
    %21 = vector.shape_cast %20 : vector<16xf32> to vector<16x1xf32>
    %cst_17 = arith.constant 3.200000e+01 : f32
    %22 = vector.broadcast %cst_17 : f32 to vector<16x1xf32>
    %23 = arith.divf %21, %22 : vector<16x1xf32>
    %24 = vector.broadcast %23 : vector<16x1xf32> to vector<16x32xf32>
    %25 = arith.subf %19, %24 : vector<16x32xf32>
    %26 = arith.mulf %25, %25 : vector<16x32xf32>
    %cst_18 = arith.constant dense<0.000000e+00> : vector<16xf32>
    %27 = vector.multi_reduction <add>, %26, %cst_18 [1] : vector<16x32xf32> to vector<16xf32>
    %28 = vector.shape_cast %27 : vector<16xf32> to vector<16x1xf32>
    %cst_19 = arith.constant 3.200000e+01 : f32
    %29 = vector.broadcast %cst_19 : f32 to vector<16x1xf32>
    %30 = arith.divf %28, %29 : vector<16x1xf32>
    %cst_20 = arith.constant 9.99999996E-13 : f32
    %31 = vector.broadcast %cst_20 : f32 to vector<16x1xf32>
    %32 = arith.addf %30, %31 : vector<16x1xf32>
    %33 = math.rsqrt %32 : vector<16x1xf32>
    %34 = vector.broadcast %33 : vector<16x1xf32> to vector<16x32xf32>
    %35 = arith.mulf %25, %34 : vector<16x32xf32>
    %36 = vector.broadcast %5 : vector<1x32xf32> to vector<16x32xf32>
    %37 = arith.mulf %35, %36 : vector<16x32xf32>
    %38 = vector.broadcast %6 : vector<1x32xf32> to vector<16x32xf32>
    %39 = arith.addf %37, %38 : vector<16x32xf32>
    %c0_21 = arith.constant 0 : index
    %c0_22 = arith.constant 0 : index
    %40 = vector.load %arg5[%c0_21, %c0_22] : memref<8x32xf32, #tpu.memory_space<vmem>>, vector<8x32xf32>
    %cst_23 = arith.constant dense<0.000000e+00> : vector<16x32xf32>
    %41 = tpu.matmul %1, %40, %cst_23 {dimension_numbers = #tpu.dot_dimension_numbers<[1], [0], [0], [1], [0, 0, 1, 1], [], []>} : vector<16x8xf32>, vector<8x32xf32>, vector<16x32xf32> -> vector<16x32xf32>
    %42 = vector.broadcast %4 : vector<1x32xf32> to vector<16x32xf32>
    %43 = arith.addf %41, %42 : vector<16x32xf32>
    %cst_24 = arith.constant dense<0.000000e+00> : vector<16xf32>
    %44 = vector.multi_reduction <add>, %43, %cst_24 [1] : vector<16x32xf32> to vector<16xf32>
    %45 = vector.shape_cast %44 : vector<16xf32> to vector<16x1xf32>
    %cst_25 = arith.constant 3.200000e+01 : f32
    %46 = vector.broadcast %cst_25 : f32 to vector<16x1xf32>
    %47 = arith.divf %45, %46 : vector<16x1xf32>
    %48 = vector.broadcast %47 : vector<16x1xf32> to vector<16x32xf32>
    %49 = arith.subf %43, %48 : vector<16x32xf32>
    %50 = arith.mulf %49, %49 : vector<16x32xf32>
    %cst_26 = arith.constant dense<0.000000e+00> : vector<16xf32>
    %51 = vector.multi_reduction <add>, %50, %cst_26 [1] : vector<16x32xf32> to vector<16xf32>
    %52 = vector.shape_cast %51 : vector<16xf32> to vector<16x1xf32>
    %cst_27 = arith.constant 3.200000e+01 : f32
    %53 = vector.broadcast %cst_27 : f32 to vector<16x1xf32>
    %54 = arith.divf %52, %53 : vector<16x1xf32>
    %cst_28 = arith.constant 9.99999996E-13 : f32
    %55 = vector.broadcast %cst_28 : f32 to vector<16x1xf32>
    %56 = arith.addf %54, %55 : vector<16x1xf32>
    %57 = math.rsqrt %56 : vector<16x1xf32>
    %58 = vector.broadcast %57 : vector<16x1xf32> to vector<16x32xf32>
    %59 = arith.mulf %49, %58 : vector<16x32xf32>
    %60 = vector.broadcast %7 : vector<1x32xf32> to vector<16x32xf32>
    %61 = arith.mulf %59, %60 : vector<16x32xf32>
    %62 = vector.broadcast %8 : vector<1x32xf32> to vector<16x32xf32>
    %63 = arith.addf %61, %62 : vector<16x32xf32>
    %64 = arith.addf %39, %63 : vector<16x32xf32>
    %c0_29 = arith.constant 0 : index
    %c0_30 = arith.constant 0 : index
    %65 = vector.load %arg3[%c0_29, %c0_30] : memref<16x32xf32, #tpu.memory_space<vmem>>, vector<16x32xf32>
    %66 = arith.addf %64, %65 : vector<16x32xf32>
    %cst_31 = arith.constant dense<0.000000e+00> : vector<16xf32>
    %67 = vector.multi_reduction <add>, %66, %cst_31 [1] : vector<16x32xf32> to vector<16xf32>
    %68 = vector.shape_cast %67 : vector<16xf32> to vector<16x1xf32>
    %cst_32 = arith.constant 3.200000e+01 : f32
    %69 = vector.broadcast %cst_32 : f32 to vector<16x1xf32>
    %70 = arith.divf %68, %69 : vector<16x1xf32>
    %71 = vector.broadcast %70 : vector<16x1xf32> to vector<16x32xf32>
    %72 = arith.subf %66, %71 : vector<16x32xf32>
    %73 = arith.mulf %72, %72 : vector<16x32xf32>
    %cst_33 = arith.constant dense<0.000000e+00> : vector<16xf32>
    %74 = vector.multi_reduction <add>, %73, %cst_33 [1] : vector<16x32xf32> to vector<16xf32>
    %75 = vector.shape_cast %74 : vector<16xf32> to vector<16x1xf32>
    %cst_34 = arith.constant 3.200000e+01 : f32
    %76 = vector.broadcast %cst_34 : f32 to vector<16x1xf32>
    %77 = arith.divf %75, %76 : vector<16x1xf32>
    %cst_35 = arith.constant 9.99999996E-13 : f32
    %78 = vector.broadcast %cst_35 : f32 to vector<16x1xf32>
    %79 = arith.addf %77, %78 : vector<16x1xf32>
    %80 = math.rsqrt %79 : vector<16x1xf32>
    %81 = vector.broadcast %80 : vector<16x1xf32> to vector<16x32xf32>
    %82 = arith.mulf %72, %81 : vector<16x32xf32>
    %83 = vector.broadcast %9 : vector<1x32xf32> to vector<16x32xf32>
    %84 = arith.mulf %82, %83 : vector<16x32xf32>
    %85 = vector.broadcast %10 : vector<1x32xf32> to vector<16x32xf32>
    %86 = arith.addf %84, %85 : vector<16x32xf32>
    %c0_36 = arith.constant 0 : index
    %c0_37 = arith.constant 0 : index
    %87 = vector.load %arg8[%c0_36, %c0_37] : memref<16x32xf32, #tpu.memory_space<vmem>>, vector<16x32xf32>
    tpu.vector_store %arg8[%c0_36, %c0_37], %86 {strides = array<i32>} : memref<16x32xf32, #tpu.memory_space<vmem>>, vector<16x32xf32>,
    return
  }
  func.func @transform_0(%arg0: i32) -> (i32, i32) {
    %c0_i32 = arith.constant 0 : i32
    %c0_i32_0 = arith.constant 0 : i32
    return %arg0, %c0_i32 : i32, i32
  }
  func.func @transform_1(%arg0: i32) -> (i32, i32) {
    %c0_i32 = arith.constant 0 : i32
    %c0_i32_0 = arith.constant 0 : i32
    return %arg0, %c0_i32 : i32, i32
  }
  func.func @transform_2(%arg0: i32) -> (i32, i32) {
    %c0_i32 = arith.constant 0 : i32
    %c0_i32_0 = arith.constant 0 : i32
    return %arg0, %c0_i32 : i32, i32
  }
  func.func @transform_3(%arg0: i32) -> (i32, i32) {
    %c0_i32 = arith.constant 0 : i32
    %c0_i32_0 = arith.constant 0 : i32
    %c0_i32_1 = arith.constant 0 : i32
    return %c0_i32, %c0_i32_0 : i32, i32
  }
  func.func @transform_4(%arg0: i32) -> (i32, i32) {
    %c0_i32 = arith.constant 0 : i32
    %c0_i32_0 = arith.constant 0 : i32
    %c0_i32_1 = arith.constant 0 : i32
    return %c0_i32, %c0_i32_0 : i32, i32
  }
  func.func @transform_5(%arg0: i32) -> (i32, i32) {
    %c0_i32 = arith.constant 0 : i32
    %c0_i32_0 = arith.constant 0 : i32
    %c0_i32_1 = arith.constant 0 : i32
    return %c0_i32, %c0_i32_0 : i32, i32
  }
  func.func @transform_6(%arg0: i32) -> (i32, i32) {
    %c0_i32 = arith.constant 0 : i32
    %c0_i32_0 = arith.constant 0 : i32
    %c0_i32_1 = arith.constant 0 : i32
    return %c0_i32, %c0_i32_0 : i32, i32
  }
  func.func @transform_7(%arg0: i32) -> (i32, i32) {
    %c0_i32 = arith.constant 0 : i32
    %c0_i32_0 = arith.constant 0 : i32
    return %arg0, %c0_i32 : i32, i32
  }
}

</mosaic_0001>

<llo_original>
// kernel: tpu_custom_call.1
$region0: #{tpu_custom_call.1}
  #allocation0 [shape = 'u32[]', space=smem, size = 0x4, offset = 0x4, fixed_abs, tag = 'smem constant byte address 0x4 - core index']
  #allocation1 [shape = 'u32[72,128]{1,0:T(1,128)}', space=vmem, size = 0x9000, scoped, tag = 'internal scratch']
  %s0 = inlined_call_operand.vmem [shape: f32[16,16], index: 0, kind: input, shape index: {}]
  %s1 = inlined_call_operand.vmem [shape: f32[16,8], index: 1, kind: input, shape index: {}]
  %s2 = inlined_call_operand.hbm [shape: f32[16,32], index: 2, kind: input, shape index: {}]
  %s3 = inlined_call_operand.hbm [shape: f32[16,32], index: 3, kind: input, shape index: {}]
  %s4 = inlined_call_operand.vmem [shape: f32[8,32], index: 4, kind: input, shape index: {}]
  %s5 = inlined_call_operand.hbm [shape: f32[8,32], index: 5, kind: input, shape index: {}]
  %s6 = inlined_call_operand.vmem [shape: f32[1,32], index: 6, kind: input, shape index: {}]
  %s7 = inlined_call_operand.hbm [shape: f32[16,32], index: 7, kind: output, shape index: {}]
  %s8 = sld [smem:[#allocation0]]
  $region50: #{tpu_custom_call.1} parent=0
    _
  %s10 = ssub.s32 1, %s8
  %s11 = scalar_select 0, %s10, %s8
  $region1: #{tpu_custom_call.1} parent=0
    #allocation2 [shape = 'u8[8192]{0}', space=vmem, size = 0x2000, scoped, tag = 'input window, operand 2, single buffered']
    #allocation3 [shape = 's32[1]{0}', space=sflag, size = 0x4, scoped, tag = 'scoped memory for tpu_custom_call.1']
    #allocation4 [shape = 's32[1]{0}', space=sflag, size = 0x4, scoped, tag = 'scoped memory for tpu_custom_call.1']
    #allocation5 [shape = 'u8[8192]{0}', space=vmem, size = 0x2000, scoped, tag = 'input window, operand 3, single buffered']
    #allocation6 [shape = 's32[1]{0}', space=sflag, size = 0x4, scoped, tag = 'scoped memory for tpu_custom_call.1']
    #allocation7 [shape = 'u8[4096]{0}', space=vmem, size = 0x1000, scoped, tag = 'input window, operand 5, single buffered']
    #allocation8 [shape = 'u8[8192]{0}', space=vmem, size = 0x2000, scoped, tag = 'output window, operand 0, single buffered']
    %12 = vsyncpa [#allocation3], 0
    %13 = vsyncpa [#allocation6], 0
    %14 = vsyncpa [#allocation4], 0
    // Predicated region
    $region2: #{tpu_custom_call.1} parent=1 // pred_check
      _
    $region3: #{tpu_custom_call.1} parent=1 // pred_check_branch
      %16 = sbr.rel (0) target = $region5
    $region4: #{tpu_custom_call.1} parent=1 // pred_region
      _
    $region5: #{tpu_custom_call.1} parent=1 // pred_fallthru
      _
    // Predicated region
    $region6: #{tpu_custom_call.1} parent=1 // pred_check
      _
    $region7: #{tpu_custom_call.1} parent=1 // pred_check_branch
      %18 = sbr.rel (0) target = $region9
    $region8: #{tpu_custom_call.1} parent=1 // pred_region
      _
    $region9: #{tpu_custom_call.1} parent=1 // pred_fallthru
      _
    // Predicated region
    $region10: #{tpu_custom_call.1} parent=1 // pred_check
      _
    $region11: #{tpu_custom_call.1} parent=1 // pred_check_branch
      %20 = sbr.rel (0) target = $region13
    $region12: #{tpu_custom_call.1} parent=1 // pred_region
      %22 = vsyncadd [#allocation3], 0
      %s23 = sshll.u32 %s2, 4
      %s24 = int_to_ptr.hbm [resolvable:$true] %s23
      %s25 = sshll.u32 [#allocation2], 4
      %s26 = int_to_ptr.vmem [resolvable:$true] %s25
      %31 = dma.hbm_to_vmem [thread:$0]  %s24, 256, %s26, [#allocation3], 128, 128, 8
    $region13: #{tpu_custom_call.1} parent=1 // pred_fallthru
      _
    // Predicated region
    $region14: #{tpu_custom_call.1} parent=1 // pred_check
      _
    $region15: #{tpu_custom_call.1} parent=1 // pred_check_branch
      %33 = sbr.rel (0) target = $region17
    $region16: #{tpu_custom_call.1} parent=1 // pred_region
      %35 = vsyncadd [#allocation6], 0
      %s36 = sshll.u32 %s3, 4
      %s37 = int_to_ptr.hbm [resolvable:$true] %s36
      %s38 = sshll.u32 [#allocation5], 4
      %s39 = int_to_ptr.vmem [resolvable:$true] %s38
      %44 = dma.hbm_to_vmem [thread:$0]  %s37, 256, %s39, [#allocation6], 128, 128, 8
    $region17: #{tpu_custom_call.1} parent=1 // pred_fallthru
      _
    // Predicated region
    $region18: #{tpu_custom_call.1} parent=1 // pred_check
      _
    $region19: #{tpu_custom_call.1} parent=1 // pred_check_branch
      %46 = sbr.rel (0) target = $region21
    $region20: #{tpu_custom_call.1} parent=1 // pred_region
      _
    $region21: #{tpu_custom_call.1} parent=1 // pred_fallthru
      _
    // Predicated region
    $region22: #{tpu_custom_call.1} parent=1 // pred_check
      _
    $region23: #{tpu_custom_call.1} parent=1 // pred_check_branch
      %48 = sbr.rel (0) target = $region25
    $region24: #{tpu_custom_call.1} parent=1 // pred_region
      %50 = vsyncadd [#allocation6], 0
      %s52 = sshll.u32 %s5, 4
      %s53 = int_to_ptr.hbm [resolvable:$true] %s52
      %s54 = sshll.u32 [#allocation7], 4
      %s55 = int_to_ptr.vmem [resolvable:$true] %s54
      %57 = dma.hbm_to_vmem [thread:$0]  %s53, 128, %s55, [#allocation6]
    $region25: #{tpu_custom_call.1} parent=1 // pred_fallthru
      _
    // Predicated region
    $region26: #{tpu_custom_call.1} parent=1 // pred_check
      _
    $region27: #{tpu_custom_call.1} parent=1 // pred_check_branch
      %59 = sbr.rel (0) target = $region29
    $region28: #{tpu_custom_call.1} parent=1 // pred_region
      _
    $region29: #{tpu_custom_call.1} parent=1 // pred_fallthru
      _
    // Predicated region
    $region30: #{tpu_custom_call.1} parent=1 // pred_check
      _
    $region31: #{tpu_custom_call.1} parent=1 // pred_check_branch
      %61 = sbr.rel (0) target = $region33
    $region32: #{tpu_custom_call.1} parent=1 // pred_region
      %63 = dma.done [#allocation3], 256
    $region33: #{tpu_custom_call.1} parent=1 // pred_fallthru
      _
    // Predicated region
    $region34: #{tpu_custom_call.1} parent=1 // pred_check
      _
    $region35: #{tpu_custom_call.1} parent=1 // pred_check_branch
      %65 = sbr.rel (0) target = $region37
    $region36: #{tpu_custom_call.1} parent=1 // pred_region
      %67 = dma.done [#allocation6], 256
    $region37: #{tpu_custom_call.1} parent=1 // pred_fallthru
      _
    // Predicated region
    $region38: #{tpu_custom_call.1} parent=1 // pred_check
      _
    $region39: #{tpu_custom_call.1} parent=1 // pred_check_branch
      %69 = sbr.rel (0) target = $region41
    $region40: #{tpu_custom_call.1} parent=1 // pred_region
      %71 = dma.done [#allocation6], 128
    $region41: #{tpu_custom_call.1} parent=1 // pred_fallthru
      _
    %v72 = vld [vmem:[%s0] sm:$0xff]
    %v73 = vld [vmem:[%s0 + $0x8] sm:$0xff]
    %v74 = vld [vmem:[%s1] sm:$0xff]
    %v75 = vld [vmem:[%s1 + $0x8] sm:$0xff]
    %v76 = vld [vmem:[#allocation7] sm:$0x1]
    %v77 = vld [vmem:[#allocation7 + $0x1] sm:$0x1]
    %v78 = vld [vmem:[#allocation7 + $0x2] sm:$0x1]
    %v79 = vld [vmem:[#allocation7 + $0x3] sm:$0x1]
    %v80 = vld [vmem:[#allocation7 + $0x4] sm:$0x1]
    %v81 = vld [vmem:[#allocation7 + $0x5] sm:$0x1]
    %v82 = vld [vmem:[#allocation7 + $0x6] sm:$0x1]
    %v83 = vld [vmem:[#allocation7 + $0x7] sm:$0x1]
    %v84 = vld [vmem:[#allocation5] sm:$0xff]
    %v85 = vld [vmem:[#allocation5 + $0x8] sm:$0xff]
    %v86 = vld [vmem:[%s6] sm:$0x1]
    %88 = vset.pattern.permute.xlu0 7
    %89 = vperm.xlu0 %88, %v74
    %v90 = vpop.permute.xlu0 %89
    %93 = vset.pattern.permute.xlu0 7
    %94 = vperm.xlu0 %93, %v75
    %v95 = vpop.permute.xlu0 %94
    %v98 = vperm.slane %v86, 0
    %v100 = vmul.f32 %v90, %v98
    %v101 = vmul.f32 %v95, %v98
    %vm102 = vcmask 130048
    %v104 = vsel %vm102, %v72, 0
    %v107 = vsel %vm102, %v73, 0
    %109 = vmatpush.msra.mxu0 0.0
    %110 = vmatpush.msra.mxu0 0.0
    %111 = vmatpush.msra.mxu0 0.0
    %112 = vmatpush.msra.mxu0 0.0
    %113 = vmatpush.msra.mxu0 0.0
    %114 = vmatpush.msra.mxu0 0.0
    %115 = vmatpush.msra.mxu0 0.0
    %116 = vmatpush.msra.mxu0 0.0
    %117 = vmatpush.msra.mxu0 0.0
    %118 = vmatpush.msra.mxu0 0.0
    %119 = vmatpush.msra.mxu0 0.0
    %120 = vmatpush.msra.mxu0 0.0
    %121 = vmatpush.msra.mxu0 0.0
    %122 = vmatpush.msra.mxu0 0.0
    %123 = vmatpush.msra.mxu0 %v85
    %124 = vmatpush.msra.mxu0 %v84
    %125 = vmatmul.f32.gmra.mxu0 %v104
    %v126 = vpop.f32.mrf.mxu0
    %v127 = vadd.f32 %v100, %v126
    %128 = vmatmul.f32.gmra.mxu0 %v107
    %v129 = vpop.f32.mrf.mxu0
    %v130 = vadd.f32 %v101, %v129
    %131 = vdwg.mxu0
    %v132 = vperm.slane %v76, 0
    %v133 = vadd.f32 %v127, %v132
    %v134 = vadd.f32 %v130, %v132
    %vm135 = vcmask 261120
    %v136 = vsel %vm135, %v133, 0.0
    %137 = vadd.xlane.f32.xlu0 %v136
    %v138 = vpop.xlane.xlu0 %137
    %v139 = vsel %vm135, %v134, 0.0
    %140 = vadd.xlane.f32.xlu0 %v139
    %v141 = vpop.xlane.xlu0 %140
    %v142 = vrcp.pop 32.0
    %v143 = vmul.f32 32.0, %v142
    %v144 = vsub.f32 1.0, %v143
    %v145 = vmul.f32 %v142, %v144
    %v146 = vadd.f32 %v142, %v145
    %vm147 = vweird.f32 %v142
    %v148 = vsel %vm147, %v142, %v146
    %v149 = vmul.f32 %v138, %v148
    %v150 = vmul.f32 %v141, %v148
    %v151 = vsub.f32 %v133, %v149
    %v152 = vsub.f32 %v134, %v150
    %v153 = vmul.f32 %v151, %v151
    %v154 = vmul.f32 %v152, %v152
    %v155 = vsel %vm135, %v153, 0.0
    %156 = vadd.xlane.f32.xlu0 %v155
    %v157 = vpop.xlane.xlu0 %156
    %v158 = vsel %vm135, %v154, 0.0
    %159 = vadd.xlane.f32.xlu0 %v158
    %v160 = vpop.xlane.xlu0 %159
    %v161 = vmul.f32 %v157, %v148
    %v162 = vmul.f32 %v160, %v148
    %v163 = vadd.f32 %v161, 1e-12
    %v164 = vadd.f32 %v162, 1e-12
    %v165 = vrsqrt.pop %v163
    %v166 = vmul.f32 %v165, %v163
    %v167 = vmul.f32 %v166, %v165
    %v168 = vmul.f32 0.5, %v167
    %v169 = vsub.f32 1.5, %v168
    %v170 = vmul.f32 %v165, %v169
    %vm171 = vweird.f32 %v163
    %vm172 = vweird.f32 %v165
    %vm173 = vmor %vm171, %vm172
    %v174 = vsel %vm173, %v165, %v170
    %v175 = vrsqrt.pop %v164
    %v176 = vmul.f32 %v175, %v164
    %v177 = vmul.f32 %v176, %v175
    %v178 = vmul.f32 0.5, %v177
    %v179 = vsub.f32 1.5, %v178
    %v180 = vmul.f32 %v175, %v179
    %vm181 = vweird.f32 %v164
    %vm182 = vweird.f32 %v175
    %vm183 = vmor %vm181, %vm182
    %v184 = vsel %vm183, %v175, %v180
    %v185 = vmul.f32 %v151, %v174
    %v186 = vmul.f32 %v152, %v184
    %v187 = vperm.slane %v78, 0
    %v188 = vmul.f32 %v185, %v187
    %v189 = vmul.f32 %v186, %v187
    %v190 = vperm.slane %v79, 0
    %v191 = vadd.f32 %v188, %v190
    %v192 = vadd.f32 %v189, %v190
    %v193 = vld [vmem:[%s4] sm:$0xff]
    %v194 = vperm.slane %v77, 0
    %vm195 = vcmask 64512
    %v196 = vsel %vm195, %v74, 0
    %v198 = vsel %vm195, %v75, 0
    %200 = vmatpush.msra.mxu0 0.0
    %201 = vmatpush.msra.mxu0 0.0
    %202 = vmatpush.msra.mxu0 0.0
    %203 = vmatpush.msra.mxu0 0.0
    %204 = vmatpush.msra.mxu0 0.0
    %205 = vmatpush.msra.mxu0 0.0
    %206 = vmatpush.msra.mxu0 0.0
    %207 = vmatpush.msra.mxu0 0.0
    %208 = vmatpush.msra.mxu0 0.0
    %209 = vmatpush.msra.mxu0 0.0
    %210 = vmatpush.msra.mxu0 0.0
    %211 = vmatpush.msra.mxu0 0.0
    %212 = vmatpush.msra.mxu0 0.0
    %213 = vmatpush.msra.mxu0 0.0
    %214 = vmatpush.msra.mxu0 0.0
    %215 = vmatpush.msra.mxu0 %v193
    %216 = vmatmul.f32.gmra.mxu0 %v196
    %v217 = vpop.f32.mrf.mxu0
    %v218 = vadd.f32 %v194, %v217
    %219 = vmatmul.f32.gmra.mxu0 %v198
    %v220 = vpop.f32.mrf.mxu0
    %v221 = vadd.f32 %v194, %v220
    %222 = vdwg.mxu0
    %v223 = vsel %vm135, %v218, 0.0
    %224 = vadd.xlane.f32.xlu0 %v223
    %v225 = vpop.xlane.xlu0 %224
    %v226 = vsel %vm135, %v221, 0.0
    %227 = vadd.xlane.f32.xlu0 %v226
    %v228 = vpop.xlane.xlu0 %227
    %v229 = vmul.f32 %v225, %v148
    %v230 = vmul.f32 %v228, %v148
    %v231 = vsub.f32 %v218, %v229
    %v232 = vsub.f32 %v221, %v230
    %v233 = vmul.f32 %v231, %v231
    %v234 = vmul.f32 %v232, %v232
    %v235 = vsel %vm135, %v233, 0.0
    %236 = vadd.xlane.f32.xlu0 %v235
    %v237 = vpop.xlane.xlu0 %236
    %v238 = vsel %vm135, %v234, 0.0
    %239 = vadd.xlane.f32.xlu0 %v238
    %v240 = vpop.xlane.xlu0 %239
    %v241 = vmul.f32 %v237, %v148
    %v242 = vmul.f32 %v240, %v148
    %v243 = vadd.f32 %v241, 1e-12
    %v244 = vadd.f32 %v242, 1e-12
    %v245 = vrsqrt.pop %v243
    %v246 = vmul.f32 %v245, %v243
    %v247 = vmul.f32 %v246, %v245
    %v248 = vmul.f32 0.5, %v247
    %v249 = vsub.f32 1.5, %v248
    %v250 = vmul.f32 %v245, %v249
    %vm251 = vweird.f32 %v243
    %vm252 = vweird.f32 %v245
    %vm253 = vmor %vm251, %vm252
    %v254 = vsel %vm253, %v245, %v250
    %v255 = vrsqrt.pop %v244
    %v256 = vmul.f32 %v255, %v244
    %v257 = vmul.f32 %v256, %v255
    %v258 = vmul.f32 0.5, %v257
    %v259 = vsub.f32 1.5, %v258
    %v260 = vmul.f32 %v255, %v259
    %vm261 = vweird.f32 %v244
    %vm262 = vweird.f32 %v255
    %vm263 = vmor %vm261, %vm262
    %v264 = vsel %vm263, %v255, %v260
    %v265 = vmul.f32 %v231, %v254
    %v266 = vmul.f32 %v232, %v264
    %v267 = vperm.slane %v80, 0
    %v268 = vmul.f32 %v265, %v267
    %v269 = vmul.f32 %v266, %v267
    %v270 = vperm.slane %v81, 0
    %v271 = vadd.f32 %v268, %v270
    %v272 = vadd.f32 %v269, %v270
    %v273 = vadd.f32 %v191, %v271
    %v274 = vadd.f32 %v192, %v272
    %v275 = vld [vmem:[#allocation2] sm:$0xff]
    %v276 = vld [vmem:[#allocation2 + $0x8] sm:$0xff]
    %v277 = vadd.f32 %v273, %v275
    %v278 = vadd.f32 %v274, %v276
    %v279 = vsel %vm135, %v277, 0.0
    %280 = vadd.xlane.f32.xlu0 %v279
    %v281 = vpop.xlane.xlu0 %280
    %v282 = vsel %vm135, %v278, 0.0
    %283 = vadd.xlane.f32.xlu0 %v282
    %v284 = vpop.xlane.xlu0 %283
    %v285 = vmul.f32 %v281, %v148
    %v286 = vmul.f32 %v284, %v148
    %v287 = vsub.f32 %v277, %v285
    %v288 = vsub.f32 %v278, %v286
    %v289 = vmul.f32 %v287, %v287
    %v290 = vmul.f32 %v288, %v288
    %v291 = vsel %vm135, %v289, 0.0
    %292 = vadd.xlane.f32.xlu0 %v291
    %v293 = vpop.xlane.xlu0 %292
    %v294 = vsel %vm135, %v290, 0.0
    %295 = vadd.xlane.f32.xlu0 %v294
    %v296 = vpop.xlane.xlu0 %295
    %v297 = vmul.f32 %v293, %v148
    %v298 = vmul.f32 %v296, %v148
    %v299 = vadd.f32 %v297, 1e-12
    %v300 = vadd.f32 %v298, 1e-12
    %v301 = vrsqrt.pop %v299
    %v302 = vmul.f32 %v301, %v299
    %v303 = vmul.f32 %v302, %v301
    %v304 = vmul.f32 0.5, %v303
    %v305 = vsub.f32 1.5, %v304
    %v306 = vmul.f32 %v301, %v305
    %vm307 = vweird.f32 %v299
    %vm308 = vweird.f32 %v301
    %vm309 = vmor %vm307, %vm308
    %v310 = vsel %vm309, %v301, %v306
    %v311 = vrsqrt.pop %v300
    %v312 = vmul.f32 %v311, %v300
    %v313 = vmul.f32 %v312, %v311
    %v314 = vmul.f32 0.5, %v313
    %v315 = vsub.f32 1.5, %v314
    %v316 = vmul.f32 %v311, %v315
    %vm317 = vweird.f32 %v300
    %vm318 = vweird.f32 %v311
    %vm319 = vmor %vm317, %vm318
    %v320 = vsel %vm319, %v311, %v316
    %v321 = vmul.f32 %v287, %v310
    %v322 = vmul.f32 %v288, %v320
    %v323 = vperm.slane %v82, 0
    %v324 = vmul.f32 %v321, %v323
    %v325 = vmul.f32 %v322, %v323
    %v326 = vperm.slane %v83, 0
    %v327 = vadd.f32 %v324, %v326
    %v328 = vadd.f32 %v325, %v326
    %329 = vst.msk [vmem:[#allocation8] sm:$0xff] %vm135, %v327
    %330 = vst.msk [vmem:[#allocation8 + $0x8] sm:$0xff] %vm135, %v328
    // Predicated region
    $region42: #{tpu_custom_call.1} parent=1 // pred_check
      _
    $region43: #{tpu_custom_call.1} parent=1 // pred_check_branch
      %332 = sbr.rel (0) target = $region45
    $region44: #{tpu_custom_call.1} parent=1 // pred_region
      %334 = vsyncadd [#allocation4], 0
      %s335 = sshll.u32 [#allocation8], 4
      %s336 = int_to_ptr.vmem [resolvable:$true] %s335
      %s337 = sshll.u32 %s7, 4
      %s338 = int_to_ptr.hbm [resolvable:$true] %s337
      %343 = dma.vmem_to_hbm [thread:$0]  %s336, 256, %s338, [#allocation4], 128, 128, 8
    $region45: #{tpu_custom_call.1} parent=1 // pred_fallthru
      _
    // Predicated region
    $region46: #{tpu_custom_call.1} parent=1 // pred_check
      _
    $region47: #{tpu_custom_call.1} parent=1 // pred_check_branch
      %345 = sbr.rel (0) target = $region49
    $region48: #{tpu_custom_call.1} parent=1 // pred_region
      %347 = dma.done [#allocation4], 256
    $region49: #{tpu_custom_call.1} parent=1 // pred_fallthru
      _
    %348 = vsyncpa [#allocation3], 1
    %349 = vsyncpa [#allocation6], 1
    %350 = vsyncpa [#allocation4], 1

</llo_original>
